<compile_context>
chip_gen: v7x
topology: tpu7x:2x2x1
jax: 0.10.0
libtpu: 0.0.40
codegen_flags: <defaults>
</compile_context>

<pallas_src>
import functools

import jax
import jax.numpy as jnp
from jax.experimental import pallas as pl
from jax.experimental.pallas import tpu as pltpu


def _dist_mlp_kernel(x_ref, w1_ref, b1_ref, w2_ref, b2_ref, w3_ref, b3_ref,
                     o_ref, *, num_classes, num_atoms):
    compute_dtype = w1_ref.dtype  # matmul input dtype (bf16 by default)

    # Layer 1 + ReLU (MXU in compute_dtype, f32 accumulation / bias / activation).
    h1 = jnp.dot(x_ref[...], w1_ref[...],
                 preferred_element_type=jnp.float32) + b1_ref[...]
    h1 = jnp.maximum(h1, 0.0).astype(compute_dtype)

    # Layer 2 + ReLU.
    h2 = jnp.dot(h1, w2_ref[...],
                 preferred_element_type=jnp.float32) + b2_ref[...]
    h2 = jnp.maximum(h2, 0.0).astype(compute_dtype)

    # Layer 3: ONE fused matmul producing all classes' logits lane-dense (tb, C*A).
    z = jnp.dot(h2, w3_ref[...],
                preferred_element_type=jnp.float32) + b3_ref[...]

    # Grouped softmax over atoms: static lane-slices of the fused logits.
    # Small unrolled loop over classes — pure VPU/EUP work, no extra matmuls.
    for c in range(num_classes):
        lo = c * num_atoms
        zc = z[:, lo:lo + num_atoms]                      # (tb, A), f32
        m = jnp.max(zc, axis=-1, keepdims=True)
        e = jnp.exp(zc - m)
        denom = jnp.sum(e, axis=-1, keepdims=True)
        # NOTE: flip approx=True on v5e to route the reciprocal to the idle EUP slot.
        p = e * pl.reciprocal(denom, approx=False)
        o_ref[:, pl.ds(lo, num_atoms)] = p


def init_params(key, input_size, hidden_size, num_classes, num_atoms):
    """Deterministic synthetic init mirroring the PyTorch module (weights as (in, out))."""
    out_size = num_classes * num_atoms
    ks = jax.random.split(key, 6)

    def kaiming_uniform(k, fan_in, fan_out):
        bound = (6.0 / fan_in) ** 0.5
        return jax.random.uniform(k, (fan_in, fan_out), jnp.float32, -bound, bound)

    def xavier_uniform(k, fan_in, fan_out):
        bound = (6.0 / (fan_in + fan_out)) ** 0.5
        return jax.random.uniform(k, (fan_in, fan_out), jnp.float32, -bound, bound)

    def bias_uniform(k, fan_in, n):
        bound = 1.0 / (fan_in ** 0.5)
        return jax.random.uniform(k, (1, n), jnp.float32, -bound, bound)

    w1 = kaiming_uniform(ks[0], input_size, hidden_size)
    b1 = bias_uniform(ks[1], input_size, hidden_size)
    w2 = kaiming_uniform(ks[2], hidden_size, hidden_size)
    b2 = bias_uniform(ks[3], hidden_size, hidden_size)
    w3 = xavier_uniform(ks[4], hidden_size, out_size)   # fused (hidden, C*A)
    b3 = bias_uniform(ks[5], hidden_size, out_size)
    return (w1, b1, w2, b2, w3, b3)


def prepare_params(flat_params, *, compute_dtype=jnp.bfloat16):
    """Cast matmul weights to the MXU compute dtype; keep biases in f32."""
    w1, b1, w2, b2, w3, b3 = flat_params
    return (w1.astype(compute_dtype), b1.astype(jnp.float32),
            w2.astype(compute_dtype), b2.astype(jnp.float32),
            w3.astype(compute_dtype), b3.astype(jnp.float32))


def distribution_net_forward(x, params, *, num_classes, num_atoms, batch_tile=256):
    """x: (batch, input_size) -> (batch, num_classes, num_atoms) float32."""
    w1, b1, w2, b2, w3, b3 = params
    compute_dtype = w1.dtype
    batch, input_size = x.shape
    hidden = w1.shape[1]
    out_size = num_classes * num_atoms
    assert w3.shape == (hidden, out_size)

    # Batch tiling: whole batch as one block if small, otherwise multiple-of-8
    # tiles (zero-pad rows so the block shape satisfies the (8, 128) rule).
    if batch <= batch_tile:
        tb, padded = batch, batch
    else:
        tb = batch_tile
        padded = ((batch + tb - 1) // tb) * tb
    xp = x.astype(compute_dtype)
    if padded != batch:
        xp = jnp.pad(xp, ((0, padded - batch), (0, 0)))
    grid = (padded // tb,)

    resident = lambda i: (0, 0)  # same block every grid step -> DMA'd from HBM once

    # Per-step VMEM budget (double-buffered x/out tiles + resident weights + live
    # activations), sized against v7x's 64 MiB VMEM.
    wsize = jnp.dtype(compute_dtype).itemsize
    tile_bytes = 2 * (tb * input_size * wsize + tb * out_size * 4)
    weight_bytes = (input_size * hidden + hidden * hidden + hidden * out_size) * wsize \
        + (2 * hidden + out_size) * 4
    act_bytes = tb * (2 * hidden + 2 * out_size) * 4
    vmem_limit = int(min(64 * 1024 * 1024,
                         max(16 * 1024 * 1024,
                             2 * (tile_bytes + weight_bytes + act_bytes))))

    out_flat = pl.pallas_call(
        functools.partial(_dist_mlp_kernel,
                          num_classes=num_classes, num_atoms=num_atoms),
        out_shape=jax.ShapeDtypeStruct((padded, out_size), jnp.float32),
        grid=grid,
        in_specs=[
            pl.BlockSpec((tb, input_size), lambda i: (i, 0)),   # x: pipelined over batch
            pl.BlockSpec((input_size, hidden), resident),       # W1 (resident)
            pl.BlockSpec((1, hidden), resident),                # b1
            pl.BlockSpec((hidden, hidden), resident),           # W2
            pl.BlockSpec((1, hidden), resident),                # b2
            pl.BlockSpec((hidden, out_size), resident),         # W3 fused (hidden, C*A)
            pl.BlockSpec((1, out_size), resident),              # b3
        ],
        out_specs=pl.BlockSpec((tb, out_size), lambda i: (i, 0)),  # lane-dense output
        compiler_params=pltpu.CompilerParams(
            dimension_semantics=("parallel",),   # megacore / v7x second TensorCore
            vmem_limit_bytes=vmem_limit,
        ),
    )(xp, w1, b1, w2, b2, w3, b3)

    out_flat = out_flat[:batch]
    # (B, C*A) -> (B, C, A): free reshape, no transpose / relayout.
    return out_flat.reshape(batch, num_classes, num_atoms)


def reference_forward(x, flat_params, *, num_classes, num_atoms,
                      matmul_dtype=jnp.float32):
    """Pure-JAX reference mirroring the PyTorch forward."""
    w1, b1, w2, b2, w3, b3 = flat_params

    def mm(a, w):
        return jnp.dot(a.astype(matmul_dtype), w.astype(matmul_dtype),
                       preferred_element_type=jnp.float32)

    h1 = jnp.maximum(mm(x, w1) + b1, 0.0)
    h2 = jnp.maximum(mm(h1, w2) + b2, 0.0)
    z = mm(h2, w3) + b3
    p = jax.nn.softmax(z.reshape(-1, num_atoms), axis=1)
    return p.reshape(-1, num_classes, num_atoms)


def _check(x, flat_params, params, *, num_classes, num_atoms):
    out = distribution_net_forward(x, params, num_classes=num_classes,
                                   num_atoms=num_atoms)
    out = jax.block_until_ready(out)
    assert out.shape == (x.shape[0], num_classes, num_atoms)

    # Tight check vs matched-precision (bf16-matmul) JAX reference: kernel plumbing.
    ref_bf16 = reference_forward(x, flat_params, num_classes=num_classes,
                                 num_atoms=num_atoms, matmul_dtype=jnp.bfloat16)
    assert jnp.allclose(out, ref_bf16, atol=1e-3, rtol=1e-3), \
        "mismatch vs matched-precision reference"

    # Semantic check vs the full-f32 PyTorch-equivalent reference (bf16 drift bound).
    ref_f32 = reference_forward(x, flat_params, num_classes=num_classes,
                                num_atoms=num_atoms, matmul_dtype=jnp.float32)
    assert jnp.allclose(out, ref_f32, atol=5e-2, rtol=5e-2), \
        "mismatch vs f32 reference"

    # Each (batch, class) distribution sums to 1.
    assert jnp.allclose(jnp.sum(out, axis=-1), 1.0, atol=1e-5), \
        "softmax not normalized"
    return out


if __name__ == "__main__":
    input_size = 16
    hidden_size = 32
    num_classes = 4
    num_atoms = 8

    key = jax.random.PRNGKey(0)
    k_params, k_x1, k_x2 = jax.random.split(key, 3)
    flat_params = init_params(k_params, input_size, hidden_size,
                              num_classes, num_atoms)
    params = prepare_params(flat_params, compute_dtype=jnp.bfloat16)

    # Small batch (single block, grid of 1).
    x_small = jax.random.normal(k_x1, (2, input_size), jnp.float32)
    _check(x_small, flat_params, params,
           num_classes=num_classes, num_atoms=num_atoms)

    # Larger, non-multiple-of-tile batch: exercises padding + the pipelined
    # "parallel" batch grid with resident weights.
    x_big = jax.random.normal(k_x2, (300, input_size), jnp.float32)
    _check(x_big, flat_params, params,
           num_classes=num_classes, num_atoms=num_atoms)

    print("KERNEL_OK")
</pallas_src>

<mosaic_0001>
module attributes {stable_mosaic.version = 11 : i64} {
  func.func @_dist_mlp_kernel(%arg0: i32, %arg1: memref<2x16xbf16, #tpu.memory_space<vmem>>, %arg2: memref<16x32xbf16, #tpu.memory_space<vmem>>, %arg3: memref<1x32xf32, #tpu.memory_space<vmem>>, %arg4: memref<32x32xbf16, #tpu.memory_space<vmem>>, %arg5: memref<1x32xf32, #tpu.memory_space<vmem>>, %arg6: memref<32x32xbf16, #tpu.memory_space<vmem>>, %arg7: memref<1x32xf32, #tpu.memory_space<vmem>>, %arg8: memref<2x32xf32, #tpu.memory_space<vmem>>) attributes {dimension_semantics = [#tpu.dimension_semantics<parallel>], iteration_bounds = array<i64: 1>, scalar_prefetch = 0 : i64, scratch_operands = 0 : i64, tpu.core_type = #tpu.core_type<tc>, window_params = [{transform_indices = @transform_0, window_bounds = array<i64: 2, 16>}, {pipeline_mode = #tpu.pipeline_mode<synchronous>, transform_indices = @transform_1, window_bounds = array<i64: 16, 32>}, {pipeline_mode = #tpu.pipeline_mode<synchronous>, transform_indices = @transform_2, window_bounds = array<i64: 1, 32>}, {pipeline_mode = #tpu.pipeline_mode<synchronous>, transform_indices = @transform_3, window_bounds = array<i64: 32, 32>}, {pipeline_mode = #tpu.pipeline_mode<synchronous>, transform_indices = @transform_4, window_bounds = array<i64: 1, 32>}, {pipeline_mode = #tpu.pipeline_mode<synchronous>, transform_indices = @transform_5, window_bounds = array<i64: 32, 32>}, {pipeline_mode = #tpu.pipeline_mode<synchronous>, transform_indices = @transform_6, window_bounds = array<i64: 1, 32>}, {transform_indices = @transform_7, window_bounds = array<i64: 2, 32>}]} {
    %c0 = arith.constant 0 : index
    %c0_0 = arith.constant 0 : index
    %0 = vector.load %arg1[%c0, %c0_0] : memref<2x16xbf16, #tpu.memory_space<vmem>>, vector<2x16xbf16>
    %c0_1 = arith.constant 0 : index
    %c0_2 = arith.constant 0 : index
    %1 = vector.load %arg2[%c0_1, %c0_2] : memref<16x32xbf16, #tpu.memory_space<vmem>>, vector<16x32xbf16>
    %cst = arith.constant dense<0.000000e+00> : vector<2x32xf32>
    %2 = tpu.matmul %0, %1, %cst {dimension_numbers = #tpu.dot_dimension_numbers<[1], [0], [0], [1], [0, 0, 1, 1], [], []>} : vector<2x16xbf16>, vector<16x32xbf16>, vector<2x32xf32> -> vector<2x32xf32>
    %c0_3 = arith.constant 0 : index
    %c0_4 = arith.constant 0 : index
    %3 = vector.load %arg3[%c0_3, %c0_4] : memref<1x32xf32, #tpu.memory_space<vmem>>, vector<1x32xf32>
    %4 = vector.broadcast %3 : vector<1x32xf32> to vector<2x32xf32>
    %5 = arith.addf %2, %4 : vector<2x32xf32>
    %cst_5 = arith.constant 0.000000e+00 : f32
    %6 = vector.broadcast %cst_5 : f32 to vector<2x32xf32>
    %7 = arith.maximumf %5, %6 : vector<2x32xf32>
    %8 = arith.truncf %7 : vector<2x32xf32> to vector<2x32xbf16>
    %c0_6 = arith.constant 0 : index
    %c0_7 = arith.constant 0 : index
    %9 = vector.load %arg4[%c0_6, %c0_7] : memref<32x32xbf16, #tpu.memory_space<vmem>>, vector<32x32xbf16>
    %cst_8 = arith.constant dense<0.000000e+00> : vector<2x32xf32>
    %10 = tpu.matmul %8, %9, %cst_8 {dimension_numbers = #tpu.dot_dimension_numbers<[1], [0], [0], [1], [0, 0, 1, 1], [], []>} : vector<2x32xbf16>, vector<32x32xbf16>, vector<2x32xf32> -> vector<2x32xf32>
    %c0_9 = arith.constant 0 : index
    %c0_10 = arith.constant 0 : index
    %11 = vector.load %arg5[%c0_9, %c0_10] : memref<1x32xf32, #tpu.memory_space<vmem>>, vector<1x32xf32>
    %12 = vector.broadcast %11 : vector<1x32xf32> to vector<2x32xf32>
    %13 = arith.addf %10, %12 : vector<2x32xf32>
    %cst_11 = arith.constant 0.000000e+00 : f32
    %14 = vector.broadcast %cst_11 : f32 to vector<2x32xf32>
    %15 = arith.maximumf %13, %14 : vector<2x32xf32>
    %16 = arith.truncf %15 : vector<2x32xf32> to vector<2x32xbf16>
    %c0_12 = arith.constant 0 : index
    %c0_13 = arith.constant 0 : index
    %17 = vector.load %arg6[%c0_12, %c0_13] : memref<32x32xbf16, #tpu.memory_space<vmem>>, vector<32x32xbf16>
    %cst_14 = arith.constant dense<0.000000e+00> : vector<2x32xf32>
    %18 = tpu.matmul %16, %17, %cst_14 {dimension_numbers = #tpu.dot_dimension_numbers<[1], [0], [0], [1], [0, 0, 1, 1], [], []>} : vector<2x32xbf16>, vector<32x32xbf16>, vector<2x32xf32> -> vector<2x32xf32>
    %c0_15 = arith.constant 0 : index
    %c0_16 = arith.constant 0 : index
    %19 = vector.load %arg7[%c0_15, %c0_16] : memref<1x32xf32, #tpu.memory_space<vmem>>, vector<1x32xf32>
    %20 = vector.broadcast %19 : vector<1x32xf32> to vector<2x32xf32>
    %21 = arith.addf %18, %20 : vector<2x32xf32>
    %22 = vector.extract_strided_slice %21 {offsets = [0, 0], sizes = [2, 8], strides = [1, 1]} : vector<2x32xf32> to vector<2x8xf32>
    %cst_17 = arith.constant dense<0xFF800000> : vector<2xf32>
    %23 = vector.multi_reduction <maximumf>, %22, %cst_17 [1] : vector<2x8xf32> to vector<2xf32>
    %24 = vector.shape_cast %23 : vector<2xf32> to vector<2x1xf32>
    %25 = vector.broadcast %24 : vector<2x1xf32> to vector<2x8xf32>
    %26 = arith.subf %22, %25 : vector<2x8xf32>
    %27 = math.exp %26 : vector<2x8xf32>
    %cst_18 = arith.constant dense<0.000000e+00> : vector<2xf32>
    %28 = vector.multi_reduction <add>, %27, %cst_18 [1] : vector<2x8xf32> to vector<2xf32>
    %29 = vector.shape_cast %28 : vector<2xf32> to vector<2x1xf32>
    %30 = tpu.reciprocal %29 : vector<2x1xf32> -> vector<2x1xf32>
    %31 = vector.broadcast %30 : vector<2x1xf32> to vector<2x8xf32>
    %32 = arith.mulf %27, %31 : vector<2x8xf32>
    %c0_19 = arith.constant 0 : index
    %c0_20 = arith.constant 0 : index
    %33 = vector.load %arg8[%c0_19, %c0_20] : memref<2x32xf32, #tpu.memory_space<vmem>>, vector<2x8xf32>
    tpu.vector_store %arg8[%c0_19, %c0_20], %32 {strides = array<i32>} : memref<2x32xf32, #tpu.memory_space<vmem>>, vector<2x8xf32>,
    %34 = vector.extract_strided_slice %21 {offsets = [0, 8], sizes = [2, 8], strides = [1, 1]} : vector<2x32xf32> to vector<2x8xf32>
    %cst_21 = arith.constant dense<0xFF800000> : vector<2xf32>
    %35 = vector.multi_reduction <maximumf>, %34, %cst_21 [1] : vector<2x8xf32> to vector<2xf32>
    %36 = vector.shape_cast %35 : vector<2xf32> to vector<2x1xf32>
    %37 = vector.broadcast %36 : vector<2x1xf32> to vector<2x8xf32>
    %38 = arith.subf %34, %37 : vector<2x8xf32>
    %39 = math.exp %38 : vector<2x8xf32>
    %cst_22 = arith.constant dense<0.000000e+00> : vector<2xf32>
    %40 = vector.multi_reduction <add>, %39, %cst_22 [1] : vector<2x8xf32> to vector<2xf32>
    %41 = vector.shape_cast %40 : vector<2xf32> to vector<2x1xf32>
    %42 = tpu.reciprocal %41 : vector<2x1xf32> -> vector<2x1xf32>
    %43 = vector.broadcast %42 : vector<2x1xf32> to vector<2x8xf32>
    %44 = arith.mulf %39, %43 : vector<2x8xf32>
    %c0_23 = arith.constant 0 : index
    %c8 = arith.constant 8 : index
    %45 = vector.load %arg8[%c0_23, %c8] : memref<2x32xf32, #tpu.memory_space<vmem>>, vector<2x8xf32>
    tpu.vector_store %arg8[%c0_23, %c8], %44 {strides = array<i32>} : memref<2x32xf32, #tpu.memory_space<vmem>>, vector<2x8xf32>,
    %46 = vector.extract_strided_slice %21 {offsets = [0, 16], sizes = [2, 8], strides = [1, 1]} : vector<2x32xf32> to vector<2x8xf32>
    %cst_24 = arith.constant dense<0xFF800000> : vector<2xf32>
    %47 = vector.multi_reduction <maximumf>, %46, %cst_24 [1] : vector<2x8xf32> to vector<2xf32>
    %48 = vector.shape_cast %47 : vector<2xf32> to vector<2x1xf32>
    %49 = vector.broadcast %48 : vector<2x1xf32> to vector<2x8xf32>
    %50 = arith.subf %46, %49 : vector<2x8xf32>
    %51 = math.exp %50 : vector<2x8xf32>
    %cst_25 = arith.constant dense<0.000000e+00> : vector<2xf32>
    %52 = vector.multi_reduction <add>, %51, %cst_25 [1] : vector<2x8xf32> to vector<2xf32>
    %53 = vector.shape_cast %52 : vector<2xf32> to vector<2x1xf32>
    %54 = tpu.reciprocal %53 : vector<2x1xf32> -> vector<2x1xf32>
    %55 = vector.broadcast %54 : vector<2x1xf32> to vector<2x8xf32>
    %56 = arith.mulf %51, %55 : vector<2x8xf32>
    %c0_26 = arith.constant 0 : index
    %c16 = arith.constant 16 : index
    %57 = vector.load %arg8[%c0_26, %c16] : memref<2x32xf32, #tpu.memory_space<vmem>>, vector<2x8xf32>
    tpu.vector_store %arg8[%c0_26, %c16], %56 {strides = array<i32>} : memref<2x32xf32, #tpu.memory_space<vmem>>, vector<2x8xf32>,
    %58 = vector.extract_strided_slice %21 {offsets = [0, 24], sizes = [2, 8], strides = [1, 1]} : vector<2x32xf32> to vector<2x8xf32>
    %cst_27 = arith.constant dense<0xFF800000> : vector<2xf32>
    %59 = vector.multi_reduction <maximumf>, %58, %cst_27 [1] : vector<2x8xf32> to vector<2xf32>
    %60 = vector.shape_cast %59 : vector<2xf32> to vector<2x1xf32>
    %61 = vector.broadcast %60 : vector<2x1xf32> to vector<2x8xf32>
    %62 = arith.subf %58, %61 : vector<2x8xf32>
    %63 = math.exp %62 : vector<2x8xf32>
    %cst_28 = arith.constant dense<0.000000e+00> : vector<2xf32>
    %64 = vector.multi_reduction <add>, %63, %cst_28 [1] : vector<2x8xf32> to vector<2xf32>
    %65 = vector.shape_cast %64 : vector<2xf32> to vector<2x1xf32>
    %66 = tpu.reciprocal %65 : vector<2x1xf32> -> vector<2x1xf32>
    %67 = vector.broadcast %66 : vector<2x1xf32> to vector<2x8xf32>
    %68 = arith.mulf %63, %67 : vector<2x8xf32>
    %c0_29 = arith.constant 0 : index
    %c24 = arith.constant 24 : index
    %69 = vector.load %arg8[%c0_29, %c24] : memref<2x32xf32, #tpu.memory_space<vmem>>, vector<2x8xf32>
    tpu.vector_store %arg8[%c0_29, %c24], %68 {strides = array<i32>} : memref<2x32xf32, #tpu.memory_space<vmem>>, vector<2x8xf32>,
    return
  }
  func.func @transform_0(%arg0: i32) -> (i32, i32) {
    %c0_i32 = arith.constant 0 : i32
    %c0_i32_0 = arith.constant 0 : i32
    return %arg0, %c0_i32 : i32, i32
  }
  func.func @transform_1(%arg0: i32) -> (i32, i32) {
    %c0_i32 = arith.constant 0 : i32
    %c0_i32_0 = arith.constant 0 : i32
    %c0_i32_1 = arith.constant 0 : i32
    return %c0_i32, %c0_i32_0 : i32, i32
  }
  func.func @transform_2(%arg0: i32) -> (i32, i32) {
    %c0_i32 = arith.constant 0 : i32
    %c0_i32_0 = arith.constant 0 : i32
    %c0_i32_1 = arith.constant 0 : i32
    return %c0_i32, %c0_i32_0 : i32, i32
  }
  func.func @transform_3(%arg0: i32) -> (i32, i32) {
    %c0_i32 = arith.constant 0 : i32
    %c0_i32_0 = arith.constant 0 : i32
    %c0_i32_1 = arith.constant 0 : i32
    return %c0_i32, %c0_i32_0 : i32, i32
  }
  func.func @transform_4(%arg0: i32) -> (i32, i32) {
    %c0_i32 = arith.constant 0 : i32
    %c0_i32_0 = arith.constant 0 : i32
    %c0_i32_1 = arith.constant 0 : i32
    return %c0_i32, %c0_i32_0 : i32, i32
  }
  func.func @transform_5(%arg0: i32) -> (i32, i32) {
    %c0_i32 = arith.constant 0 : i32
    %c0_i32_0 = arith.constant 0 : i32
    %c0_i32_1 = arith.constant 0 : i32
    return %c0_i32, %c0_i32_0 : i32, i32
  }
  func.func @transform_6(%arg0: i32) -> (i32, i32) {
    %c0_i32 = arith.constant 0 : i32
    %c0_i32_0 = arith.constant 0 : i32
    %c0_i32_1 = arith.constant 0 : i32
    return %c0_i32, %c0_i32_0 : i32, i32
  }
  func.func @transform_7(%arg0: i32) -> (i32, i32) {
    %c0_i32 = arith.constant 0 : i32
    %c0_i32_0 = arith.constant 0 : i32
    return %arg0, %c0_i32 : i32, i32
  }
}

</mosaic_0001>

<llo_original>
// kernel: tpu_custom_call.1
$region0: #{tpu_custom_call.1}
  #allocation0 [shape = 'u32[]', space=smem, size = 0x4, offset = 0x4, fixed_abs, tag = 'smem constant byte address 0x4 - core index']
  #allocation1 [shape = 'u32[144,128]{1,0:T(1,128)}', space=vmem, size = 0x12000, scoped, tag = 'internal scratch']
  %s0 = inlined_call_operand.hbm [shape: bf16[2,16], index: 0, kind: input, shape index: {}]
  %s1 = inlined_call_operand.hbm [shape: bf16[16,32], index: 1, kind: input, shape index: {}]
  %s2 = inlined_call_operand.vmem [shape: f32[1,32], index: 2, kind: input, shape index: {}]
  %s3 = inlined_call_operand.hbm [shape: bf16[32,32], index: 3, kind: input, shape index: {}]
  %s4 = inlined_call_operand.vmem [shape: f32[1,32], index: 4, kind: input, shape index: {}]
  %s5 = inlined_call_operand.vmem [shape: bf16[32,32], index: 5, kind: input, shape index: {}]
  %s6 = inlined_call_operand.vmem [shape: f32[1,32], index: 6, kind: input, shape index: {}]
  %s7 = inlined_call_operand.hbm [shape: f32[2,32], index: 7, kind: output, shape index: {}]
  %s8 = sld [smem:[#allocation0]]
  $region50: #{tpu_custom_call.1} parent=0
    _
  %s10 = ssub.s32 1, %s8
  %s11 = scalar_select 0, %s10, %s8
  $region1: #{tpu_custom_call.1} parent=0
    #allocation2 [shape = 'u8[512]{0}', space=vmem, size = 0x400, scoped, tag = 'input window, operand 0, single buffered']
    #allocation3 [shape = 's32[1]{0}', space=sflag, size = 0x4, scoped, tag = 'scoped memory for tpu_custom_call.1']
    #allocation4 [shape = 's32[1]{0}', space=sflag, size = 0x4, scoped, tag = 'scoped memory for tpu_custom_call.1']
    #allocation5 [shape = 'u8[4096]{0}', space=vmem, size = 0x1000, scoped, tag = 'input window, operand 1, single buffered']
    #allocation6 [shape = 's32[1]{0}', space=sflag, size = 0x4, scoped, tag = 'scoped memory for tpu_custom_call.1']
    #allocation7 [shape = 'u8[8192]{0}', space=vmem, size = 0x2000, scoped, tag = 'input window, operand 3, single buffered']
    #allocation8 [shape = 'u8[1024]{0}', space=vmem, size = 0x400, scoped, tag = 'output window, operand 0, single buffered']
    %12 = vsyncpa [#allocation3], 0
    %13 = vsyncpa [#allocation6], 0
    %14 = vsyncpa [#allocation4], 0
    // Predicated region
    $region2: #{tpu_custom_call.1} parent=1 // pred_check
      _
    $region3: #{tpu_custom_call.1} parent=1 // pred_check_branch
      %16 = sbr.rel (0) target = $region5
    $region4: #{tpu_custom_call.1} parent=1 // pred_region
      %s18 = ssub.s32 16, 16
      %19 = vsyncadd [#allocation3], %s18
      %s21 = sshll.u32 [#allocation2], 4
      %s22 = int_to_ptr.vmem [resolvable:$true] %s21
      %24 = dma.hbm_to_vmem [thread:$0]  %s0, 16, %s22, [#allocation3]
    $region5: #{tpu_custom_call.1} parent=1 // pred_fallthru
      _
    // Predicated region
    $region6: #{tpu_custom_call.1} parent=1 // pred_check
      _
    $region7: #{tpu_custom_call.1} parent=1 // pred_check_branch
      %26 = sbr.rel (0) target = $region9
    $region8: #{tpu_custom_call.1} parent=1 // pred_region
      %s28 = ssub.s32 128, 128
      %29 = vsyncadd [#allocation6], %s28
      %s30 = sshll.u32 [#allocation5], 4
      %s31 = int_to_ptr.vmem [resolvable:$true] %s30
      %36 = dma.hbm_to_vmem [thread:$0]  %s1, 128, %s31, [#allocation6], 64, 64, 4
    $region9: #{tpu_custom_call.1} parent=1 // pred_fallthru
      _
    // Predicated region
    $region10: #{tpu_custom_call.1} parent=1 // pred_check
      _
    $region11: #{tpu_custom_call.1} parent=1 // pred_check_branch
      %38 = sbr.rel (0) target = $region13
    $region12: #{tpu_custom_call.1} parent=1 // pred_region
      _
    $region13: #{tpu_custom_call.1} parent=1 // pred_fallthru
      _
    // Predicated region
    $region14: #{tpu_custom_call.1} parent=1 // pred_check
      _
    $region15: #{tpu_custom_call.1} parent=1 // pred_check_branch
      %40 = sbr.rel (0) target = $region17
    $region16: #{tpu_custom_call.1} parent=1 // pred_region
      %s42 = ssub.s32 256, 256
      %43 = vsyncadd [#allocation6], %s42
      %s44 = sshll.u32 [#allocation7], 4
      %s45 = int_to_ptr.vmem [resolvable:$true] %s44
      %50 = dma.hbm_to_vmem [thread:$0]  %s3, 256, %s45, [#allocation6], 64, 64, 4
    $region17: #{tpu_custom_call.1} parent=1 // pred_fallthru
      _
    // Predicated region
    $region18: #{tpu_custom_call.1} parent=1 // pred_check
      _
    $region19: #{tpu_custom_call.1} parent=1 // pred_check_branch
      %52 = sbr.rel (0) target = $region21
    $region20: #{tpu_custom_call.1} parent=1 // pred_region
      _
    $region21: #{tpu_custom_call.1} parent=1 // pred_fallthru
      _
    // Predicated region
    $region22: #{tpu_custom_call.1} parent=1 // pred_check
      _
    $region23: #{tpu_custom_call.1} parent=1 // pred_check_branch
      %54 = sbr.rel (0) target = $region25
    $region24: #{tpu_custom_call.1} parent=1 // pred_region
      _
    $region25: #{tpu_custom_call.1} parent=1 // pred_fallthru
      _
    // Predicated region
    $region26: #{tpu_custom_call.1} parent=1 // pred_check
      _
    $region27: #{tpu_custom_call.1} parent=1 // pred_check_branch
      %56 = sbr.rel (0) target = $region29
    $region28: #{tpu_custom_call.1} parent=1 // pred_region
      _
    $region29: #{tpu_custom_call.1} parent=1 // pred_fallthru
      _
    // Predicated region
    $region30: #{tpu_custom_call.1} parent=1 // pred_check
      _
    $region31: #{tpu_custom_call.1} parent=1 // pred_check_branch
      %58 = sbr.rel (0) target = $region33
    $region32: #{tpu_custom_call.1} parent=1 // pred_region
      %59 = dma.done [#allocation3], 16
    $region33: #{tpu_custom_call.1} parent=1 // pred_fallthru
      _
    // Predicated region
    $region34: #{tpu_custom_call.1} parent=1 // pred_check
      _
    $region35: #{tpu_custom_call.1} parent=1 // pred_check_branch
      %61 = sbr.rel (0) target = $region37
    $region36: #{tpu_custom_call.1} parent=1 // pred_region
      %62 = dma.done [#allocation6], 128
    $region37: #{tpu_custom_call.1} parent=1 // pred_fallthru
      _
    // Predicated region
    $region38: #{tpu_custom_call.1} parent=1 // pred_check
      _
    $region39: #{tpu_custom_call.1} parent=1 // pred_check_branch
      %64 = sbr.rel (0) target = $region41
    $region40: #{tpu_custom_call.1} parent=1 // pred_region
      %65 = dma.done [#allocation6], 256
    $region41: #{tpu_custom_call.1} parent=1 // pred_fallthru
      _
    %v67 = vld [vmem:[#allocation2] sm:$0x1]
    %v68 = vld [vmem:[#allocation5] sm:$0xf]
    %v69 = vld [vmem:[#allocation5 + $0x4] sm:$0xf]
    %v70 = vld [vmem:[%s2] sm:$0x1]
    %v72 = vlaneseq
    %v73 = vshrl.u32 %v72, 7
    %v74 = vsub.s32 0, %v73
    %v75 = vrot.slane %v70, %v74
    %v79 = vunpack.c.l.b16 %v68
    %v80 = vunpack.c.l.b16 %v69
    %v81 = vpack.c.b16 %v80, %v79
    %vm83 = vcmask 130048
    %v85 = vsel %vm83, %v67, 0
    %87 = vmatprep.subr.bf16.mxu0 0
    %88 = vmatpush1.bf16.msra.mxu0 %v81
    %89 = vmatprep.subr.bf16.mxu0 0
    %90 = vmatpush1.bf16.msra.mxu0 0
    %91 = vmatprep.subr.bf16.mxu0 0
    %92 = vmatpush1.bf16.msra.mxu0 0
    %93 = vmatprep.subr.bf16.mxu0 0
    %94 = vmatpush1.bf16.msra.mxu0 0
    %95 = vmatprep.subr.bf16.mxu0 0
    %96 = vmatpush1.bf16.msra.mxu0 0
    %97 = vmatprep.subr.bf16.mxu0 0
    %98 = vmatpush1.bf16.msra.mxu0 0
    %99 = vmatprep.subr.bf16.mxu0 0
    %100 = vmatpush1.bf16.msra.mxu0 0
    %101 = vmatprep.subr.bf16.mxu0 0
    %102 = vmatpush1.bf16.msra.mxu0 0
    %103 = vmatprep.subr.bf16.mxu0 0
    %104 = vmatpush1.bf16.msra.mxu0 0
    %105 = vmatprep.subr.bf16.mxu0 0
    %106 = vmatpush1.bf16.msra.mxu0 0
    %107 = vmatprep.subr.bf16.mxu0 0
    %108 = vmatpush1.bf16.msra.mxu0 0
    %109 = vmatprep.subr.bf16.mxu0 0
    %110 = vmatpush1.bf16.msra.mxu0 0
    %111 = vmatprep.subr.bf16.mxu0 0
    %112 = vmatpush1.bf16.msra.mxu0 0
    %113 = vmatprep.subr.bf16.mxu0 0
    %114 = vmatpush1.bf16.msra.mxu0 0
    %115 = vmatprep.subr.bf16.mxu0 0
    %116 = vmatpush1.bf16.msra.mxu0 0
    %117 = vmatprep.subr.bf16.mxu0 0
    %118 = vmatpush1.bf16.msra.mxu0 0
    %119 = vmatprep.mubr.bf16.mxu0 0
    %120 = vmatmul.mubr.bf16.gmra.mrb[0].mxu0 %v85
    %v121 = vpop.f32.mrb[0].mxu0
    %v122 = vadd.f32 %v75, %v121
    %v123 = vpop.f32.mrb[0].mxu0
    %v124 = vpop.f32.mrb[0].mxu0
    %v125 = vpop.f32.mrb[0].mxu0
    %126 = vdwg.mxu0
    %v127 = vmax.f32 %v122, 0.0
    %v128 = vpack.c.bf16 %v127, %v127
    %v129 = vld [vmem:[#allocation7] sm:$0xf]
    %v130 = vld [vmem:[#allocation7 + $0x4] sm:$0xf]
    %v131 = vld [vmem:[#allocation7 + $0x8] sm:$0xf]
    %v132 = vld [vmem:[#allocation7 + $0xc] sm:$0xf]
    %v133 = vld [vmem:[%s4] sm:$0x1]
    %v135 = vlaneseq
    %v136 = vshrl.u32 %v135, 7
    %v137 = vsub.s32 0, %v136
    %v138 = vrot.slane %v133, %v137
    %v144 = vunpack.c.l.b16 %v129
    %v145 = vunpack.c.l.b16 %v130
    %v146 = vunpack.c.l.b16 %v131
    %v147 = vunpack.c.l.b16 %v132
    %v148 = vpack.c.b16 %v145, %v144
    %v149 = vpack.c.b16 %v147, %v146
    %vm152 = vcmask 261120
    %v154 = vsel %vm152, %v128, 0
    %156 = vmatprep.subr.bf16.mxu0 0
    %157 = vmatpush1.bf16.msra.mxu0 %v148
    %158 = vmatprep.subr.bf16.mxu0 0
    %159 = vmatpush1.bf16.msra.mxu0 %v149
    %160 = vmatprep.subr.bf16.mxu0 0
    %161 = vmatpush1.bf16.msra.mxu0 0
    %162 = vmatprep.subr.bf16.mxu0 0
    %163 = vmatpush1.bf16.msra.mxu0 0
    %164 = vmatprep.subr.bf16.mxu0 0
    %165 = vmatpush1.bf16.msra.mxu0 0
    %166 = vmatprep.subr.bf16.mxu0 0
    %167 = vmatpush1.bf16.msra.mxu0 0
    %168 = vmatprep.subr.bf16.mxu0 0
    %169 = vmatpush1.bf16.msra.mxu0 0
    %170 = vmatprep.subr.bf16.mxu0 0
    %171 = vmatpush1.bf16.msra.mxu0 0
    %172 = vmatprep.subr.bf16.mxu0 0
    %173 = vmatpush1.bf16.msra.mxu0 0
    %174 = vmatprep.subr.bf16.mxu0 0
    %175 = vmatpush1.bf16.msra.mxu0 0
    %176 = vmatprep.subr.bf16.mxu0 0
    %177 = vmatpush1.bf16.msra.mxu0 0
    %178 = vmatprep.subr.bf16.mxu0 0
    %179 = vmatpush1.bf16.msra.mxu0 0
    %180 = vmatprep.subr.bf16.mxu0 0
    %181 = vmatpush1.bf16.msra.mxu0 0
    %182 = vmatprep.subr.bf16.mxu0 0
    %183 = vmatpush1.bf16.msra.mxu0 0
    %184 = vmatprep.subr.bf16.mxu0 0
    %185 = vmatpush1.bf16.msra.mxu0 0
    %186 = vmatprep.subr.bf16.mxu0 0
    %187 = vmatpush1.bf16.msra.mxu0 0
    %188 = vmatprep.mubr.bf16.mxu0 0
    %189 = vmatmul.mubr.bf16.gmra.mrb[0].mxu0 %v154
    %v190 = vpop.f32.mrb[0].mxu0
    %v191 = vadd.f32 %v138, %v190
    %v192 = vpop.f32.mrb[0].mxu0
    %v193 = vpop.f32.mrb[0].mxu0
    %v194 = vpop.f32.mrb[0].mxu0
    %195 = vdwg.mxu0
    %v196 = vmax.f32 %v191, 0.0
    %v197 = vpack.c.bf16 %v196, %v196
    %v198 = vld [vmem:[%s5] sm:$0xf]
    %v199 = vld [vmem:[%s5 + $0x4] sm:$0xf]
    %v200 = vld [vmem:[%s5 + $0x8] sm:$0xf]
    %v201 = vld [vmem:[%s5 + $0xc] sm:$0xf]
    %v202 = vld [vmem:[%s6] sm:$0x1]
    %v204 = vlaneseq
    %v205 = vshrl.u32 %v204, 7
    %v206 = vsub.s32 0, %v205
    %v207 = vrot.slane %v202, %v206
    %v213 = vunpack.c.l.b16 %v198
    %v214 = vunpack.c.l.b16 %v199
    %v215 = vunpack.c.l.b16 %v200
    %v216 = vunpack.c.l.b16 %v201
    %v217 = vpack.c.b16 %v214, %v213
    %v218 = vpack.c.b16 %v216, %v215
    %v222 = vsel %vm152, %v197, 0
    %224 = vmatprep.subr.bf16.mxu0 0
    %225 = vmatpush1.bf16.msra.mxu0 %v217
    %226 = vmatprep.subr.bf16.mxu0 0
    %227 = vmatpush1.bf16.msra.mxu0 %v218
    %228 = vmatprep.subr.bf16.mxu0 0
    %229 = vmatpush1.bf16.msra.mxu0 0
    %230 = vmatprep.subr.bf16.mxu0 0
    %231 = vmatpush1.bf16.msra.mxu0 0
    %232 = vmatprep.subr.bf16.mxu0 0
    %233 = vmatpush1.bf16.msra.mxu0 0
    %234 = vmatprep.subr.bf16.mxu0 0
    %235 = vmatpush1.bf16.msra.mxu0 0
    %236 = vmatprep.subr.bf16.mxu0 0
    %237 = vmatpush1.bf16.msra.mxu0 0
    %238 = vmatprep.subr.bf16.mxu0 0
    %239 = vmatpush1.bf16.msra.mxu0 0
    %240 = vmatprep.subr.bf16.mxu0 0
    %241 = vmatpush1.bf16.msra.mxu0 0
    %242 = vmatprep.subr.bf16.mxu0 0
    %243 = vmatpush1.bf16.msra.mxu0 0
    %244 = vmatprep.subr.bf16.mxu0 0
    %245 = vmatpush1.bf16.msra.mxu0 0
    %246 = vmatprep.subr.bf16.mxu0 0
    %247 = vmatpush1.bf16.msra.mxu0 0
    %248 = vmatprep.subr.bf16.mxu0 0
    %249 = vmatpush1.bf16.msra.mxu0 0
    %250 = vmatprep.subr.bf16.mxu0 0
    %251 = vmatpush1.bf16.msra.mxu0 0
    %252 = vmatprep.subr.bf16.mxu0 0
    %253 = vmatpush1.bf16.msra.mxu0 0
    %254 = vmatprep.subr.bf16.mxu0 0
    %255 = vmatpush1.bf16.msra.mxu0 0
    %256 = vmatprep.mubr.bf16.mxu0 0
    %257 = vmatmul.mubr.bf16.gmra.mrb[0].mxu0 %v222
    %v258 = vpop.f32.mrb[0].mxu0
    %v259 = vadd.f32 %v207, %v258
    %v260 = vpop.f32.mrb[0].mxu0
    %v261 = vpop.f32.mrb[0].mxu0
    %v262 = vpop.f32.mrb[0].mxu0
    %263 = vdwg.mxu0
    %vm264 = vcmask 58368
    %v265 = vsel %vm264, %v259, -inf
    %266 = vmax.xlane.f32.xlu0 %v265
    %v267 = vpop.xlane.xlu0 %266
    %v268 = vsub.f32 %v259, %v267
    %v269 = vmul.f32 %v268, 1.442695
    %v270 = vpow.pop %v269
    %v271 = vsel %vm264, %v270, 0.0
    %272 = vadd.xlane.f32.xlu0 %v271
    %v273 = vpop.xlane.xlu0 %272
    %v274 = vrcp.pop %v273
    %v275 = vmul.f32 %v270, %v274
    %276 = vst.msk [vmem:[#allocation8] sm:$0x3] %vm264, %v275
    %vm277 = vcmask 123968
    %v278 = vsel %vm277, %v259, -inf
    %279 = vmax.xlane.f32.xlu0 %v278
    %v280 = vpop.xlane.xlu0 %279
    %v281 = vsub.f32 %v259, %v280
    %v282 = vmul.f32 %v281, 1.442695
    %v283 = vpow.pop %v282
    %285 = vrot.lane.b32.xlu0 %v283, 120
    %v286 = vpop.permute.xlu0 %285
    %v288 = vsel %vm264, %v286, 0.0
    %289 = vadd.xlane.f32.xlu0 %v288
    %v290 = vpop.xlane.xlu0 %289
    %v291 = vrcp.pop %v290
    %v292 = vmul.f32 %v283, %v291
    %293 = vst.msk [vmem:[#allocation8] sm:$0x3] %vm277, %v292
    %vm294 = vcmask 189568
    %v295 = vsel %vm294, %v259, -inf
    %296 = vmax.xlane.f32.xlu0 %v295
    %v297 = vpop.xlane.xlu0 %296
    %v298 = vsub.f32 %v259, %v297
    %v299 = vmul.f32 %v298, 1.442695
    %v300 = vpow.pop %v299
    %302 = vrot.lane.b32.xlu0 %v300, 112
    %v303 = vpop.permute.xlu0 %302
    %v305 = vsel %vm264, %v303, 0.0
    %306 = vadd.xlane.f32.xlu0 %v305
    %v307 = vpop.xlane.xlu0 %306
    %v308 = vrcp.pop %v307
    %v309 = vmul.f32 %v300, %v308
    %310 = vst.msk [vmem:[#allocation8] sm:$0x3] %vm294, %v309
    %vm311 = vcmask 255168
    %v312 = vsel %vm311, %v259, -inf
    %313 = vmax.xlane.f32.xlu0 %v312
    %v314 = vpop.xlane.xlu0 %313
    %v315 = vsub.f32 %v259, %v314
    %v316 = vmul.f32 %v315, 1.442695
    %v317 = vpow.pop %v316
    %319 = vrot.lane.b32.xlu0 %v317, 104
    %v320 = vpop.permute.xlu0 %319
    %v322 = vsel %vm264, %v320, 0.0
    %323 = vadd.xlane.f32.xlu0 %v322
    %v324 = vpop.xlane.xlu0 %323
    %v325 = vrcp.pop %v324
    %v326 = vmul.f32 %v317, %v325
    %327 = vst.msk [vmem:[#allocation8] sm:$0x3] %vm311, %v326
    // Predicated region
    $region42: #{tpu_custom_call.1} parent=1 // pred_check
      _
    $region43: #{tpu_custom_call.1} parent=1 // pred_check_branch
      %329 = sbr.rel (0) target = $region45
    $region44: #{tpu_custom_call.1} parent=1 // pred_region
      %s331 = ssub.s32 32, 32
      %332 = vsyncadd [#allocation4], %s331
      %s334 = sshll.u32 [#allocation8], 4
      %s335 = int_to_ptr.vmem [resolvable:$true] %s334
      %337 = dma.vmem_to_hbm [thread:$0]  %s335, 32, %s7, [#allocation4]
    $region45: #{tpu_custom_call.1} parent=1 // pred_fallthru
      _
    // Predicated region
    $region46: #{tpu_custom_call.1} parent=1 // pred_check
      _
    $region47: #{tpu_custom_call.1} parent=1 // pred_check_branch
      %339 = sbr.rel (0) target = $region49
    $region48: #{tpu_custom_call.1} parent=1 // pred_region
      %340 = dma.done [#allocation4], 32
    $region49: #{tpu_custom_call.1} parent=1 // pred_fallthru
      _
    %341 = vsyncpa [#allocation3], 1
    %342 = vsyncpa [#allocation6], 1
    %343 = vsyncpa [#allocation4], 1

</llo_original>
